<compile_context>
chip_gen: v6e
topology: v6e:2x2x1
jax: 0.10.0
libtpu: 0.0.40
codegen_flags: <defaults>
</compile_context>

<pallas_src>
import functools

import jax
import jax.numpy as jnp
from jax.experimental import pallas as pl
from jax.experimental.pallas import tpu as pltpu


def _hairnet_loss_kernel(out_ref, conv_ref, w_ref, loss_ref, acc_ref, *,
                         a_scaled, b_scaled, hw):
    # out_ref, conv_ref: [TM, 4*hw]  (VMEM tile, channels concatenated along lanes)
    # w_ref:             [TM, hw]    (VMEM tile)
    # loss_ref:          [1, 1]      (SMEM output, written once at the end)
    # acc_ref:           [TM, hw]    (VMEM scratch accumulator, resident across the grid)
    @pl.when(pl.program_id(0) == 0)
    def _():
        acc_ref[...] = jnp.zeros_like(acc_ref)

    w = w_ref[...].astype(jnp.float32)

    def diff(c):
        # Lane-aligned static channel slice (offset multiple of 1024 -> free).
        lo = c * hw
        hi = lo + hw
        return (conv_ref[:, lo:hi].astype(jnp.float32)
                - out_ref[:, lo:hi].astype(jnp.float32))

    # Stream channels one at a time to bound live ranges.
    d = diff(0)
    pos = d * d
    d = diff(1)
    pos = pos + d * d
    d = diff(2)
    pos = pos + d * d
    d = diff(3)
    cur = d * d

    # Fused, pre-scaled weighted term; pure VPU elementwise accumulate each step.
    acc_ref[...] += w * (jnp.float32(a_scaled) * pos + jnp.float32(b_scaled) * cur)

    @pl.when(pl.program_id(0) == pl.num_programs(0) - 1)
    def _():
        loss_ref[0, 0] = jnp.sum(acc_ref[...])


def hairnet_loss(output, convdata, visweight, *, alpha=1.0, beta=1.0, batch_size=1):
    B, S, C, H, W = output.shape
    assert C == 4 and H == 32 and W == 32, "HairNetLoss assumes 4 channels on a 32x32 grid"
    N = B * S
    HW = H * W  # 1024

    # Free row-major reshapes (no transpose, no HBM copy).
    out_r = output.reshape(N, C * HW)     # [N, 4096]
    conv_r = convdata.reshape(N, C * HW)  # [N, 4096]
    w_r = visweight.reshape(N, HW)        # [N, 1024]

    def _round_up(x, m):
        return ((x + m - 1) // m) * m

    # Row tile (sublane dim): large, multiple of 8, capped at 256 so the
    # double-buffered tiles stay well under every chip's VMEM.
    TM = min(256, _round_up(N, 8))
    N_pad = _round_up(N, TM)
    if N_pad != N:
        pad = N_pad - N
        # Zero visweight rows => padded rows contribute exactly 0 to the loss.
        out_r = jnp.pad(out_r, ((0, pad), (0, 0)))
        conv_r = jnp.pad(conv_r, ((0, pad), (0, 0)))
        w_r = jnp.pad(w_r, ((0, pad), (0, 0)))

    grid = (N_pad // TM,)

    # Fold the 1/(1024*bs) normalization into the loss weights at trace time.
    a_scaled = float(alpha) / (1024.0 * float(batch_size))
    b_scaled = float(beta) / (1024.0 * float(batch_size))

    kernel = functools.partial(
        _hairnet_loss_kernel, a_scaled=a_scaled, b_scaled=b_scaled, hw=HW
    )

    # VMEM budget: 2 double-buffered [TM,4096] inputs + 1 double-buffered [TM,1024]
    # input + 1 [TM,1024] scratch accumulator, plus headroom.
    bytes_per_in_buf = (2 * C * TM * HW + TM * HW) * 4
    vmem_limit = 2 * bytes_per_in_buf + TM * HW * 4 + (4 << 20)
    vmem_limit = max(int(vmem_limit), 32 << 20)  # <= 32 MiB-ish: safe on v5e/v6e/v7x

    loss = pl.pallas_call(
        kernel,
        out_shape=jax.ShapeDtypeStruct((1, 1), jnp.float32),
        grid_spec=pltpu.PrefetchScalarGridSpec(
            num_scalar_prefetch=0,
            grid=grid,
            in_specs=[
                pl.BlockSpec((TM, C * HW), lambda i: (i, 0)),
                pl.BlockSpec((TM, C * HW), lambda i: (i, 0)),
                pl.BlockSpec((TM, HW), lambda i: (i, 0)),
            ],
            out_specs=pl.BlockSpec(memory_space=pltpu.MemorySpace.SMEM),
            scratch_shapes=[pltpu.VMEM((TM, HW), jnp.float32)],
        ),
        compiler_params=pltpu.CompilerParams(
            dimension_semantics=("arbitrary",),
            vmem_limit_bytes=vmem_limit,
        ),
    )(out_r, conv_r, w_r)

    return loss[0, 0]


def hairnet_loss_ref(output, convdata, visweight, *, alpha=1.0, beta=1.0, batch_size=1):
    d2 = (convdata.astype(jnp.float32) - output.astype(jnp.float32)) ** 2  # [B,S,4,32,32]
    w = visweight.astype(jnp.float32)                                      # [B,S,32,32]
    pos = jnp.sum(w * (d2[:, :, 0] + d2[:, :, 1] + d2[:, :, 2]))
    cur = jnp.sum(w * d2[:, :, 3])
    return (alpha * pos + beta * cur) / (1024.0 * batch_size)


if __name__ == "__main__":
    key = jax.random.PRNGKey(0)
    k1, k2, k3 = jax.random.split(key, 3)

    B, S = 2, 8  # small batch / strand count; spatial grid fixed at 32x32 by the module
    output = jax.random.normal(k1, (B, S, 4, 32, 32), dtype=jnp.float32)
    convdata = jax.random.normal(k2, (B, S, 4, 32, 32), dtype=jnp.float32)
    visweight = jax.random.uniform(k3, (B, S, 32, 32), dtype=jnp.float32)

    alpha, beta = 1.0, 1.0
    loss = hairnet_loss(
        output, convdata, visweight, alpha=alpha, beta=beta, batch_size=B
    )
    loss = jax.block_until_ready(loss)

    ref = hairnet_loss_ref(
        output, convdata, visweight, alpha=alpha, beta=beta, batch_size=B
    )
    assert jnp.allclose(loss, ref, rtol=1e-5, atol=1e-5), (loss, ref)

    print("KERNEL_OK")
</pallas_src>

<mosaic_0001>
module attributes {stable_mosaic.version = 11 : i64} {
  func.func @_hairnet_loss_kernel(%arg0: i32, %arg1: memref<16x4096xf32, #tpu.memory_space<vmem>>, %arg2: memref<16x4096xf32, #tpu.memory_space<vmem>>, %arg3: memref<16x1024xf32, #tpu.memory_space<vmem>>, %arg4: memref<1x1xf32, #tpu.memory_space<smem>>, %arg5: memref<16x1024xf32, #tpu.memory_space<vmem>>) attributes {dimension_semantics = [#tpu.dimension_semantics<arbitrary>], iteration_bounds = array<i64: 1>, scalar_prefetch = 0 : i64, scratch_operands = 1 : i64, tpu.core_type = #tpu.core_type<tc>, window_params = [{transform_indices = @transform_0, window_bounds = array<i64: 16, 4096>}, {transform_indices = @transform_1, window_bounds = array<i64: 16, 4096>}, {transform_indices = @transform_2, window_bounds = array<i64: 16, 1024>}, {transform_indices = @transform_3, window_bounds = array<i64: 1, 1>}]} {
    %c0_i32 = arith.constant 0 : i32
    %0 = arith.cmpi eq, %arg0, %c0_i32 : i32
    %1 = arith.extui %0 : i1 to i32
    %c0_i32_0 = arith.constant 0 : i32
    %2 = arith.cmpi ne, %1, %c0_i32_0 : i32
    scf.if %2 {
      %cst_22 = arith.constant 0.000000e+00 : f32
      %34 = vector.broadcast %cst_22 : f32 to vector<16x1024xf32>
      %c0_23 = arith.constant 0 : index
      %c0_24 = arith.constant 0 : index
      %35 = vector.load %arg5[%c0_23, %c0_24] : memref<16x1024xf32, #tpu.memory_space<vmem>>, vector<16x1024xf32>
      tpu.vector_store %arg5[%c0_23, %c0_24], %34 {strides = array<i32>} : memref<16x1024xf32, #tpu.memory_space<vmem>>, vector<16x1024xf32>,
    } else {
    }
    %c0 = arith.constant 0 : index
    %c0_1 = arith.constant 0 : index
    %3 = vector.load %arg3[%c0, %c0_1] : memref<16x1024xf32, #tpu.memory_space<vmem>>, vector<16x1024xf32>
    %c0_2 = arith.constant 0 : index
    %c0_3 = arith.constant 0 : index
    %4 = vector.load %arg2[%c0_2, %c0_3] : memref<16x4096xf32, #tpu.memory_space<vmem>>, vector<16x1024xf32>
    %c0_4 = arith.constant 0 : index
    %c0_5 = arith.constant 0 : index
    %5 = vector.load %arg1[%c0_4, %c0_5] : memref<16x4096xf32, #tpu.memory_space<vmem>>, vector<16x1024xf32>
    %6 = arith.subf %4, %5 : vector<16x1024xf32>
    %7 = arith.mulf %6, %6 : vector<16x1024xf32>
    %c0_6 = arith.constant 0 : index
    %c1024 = arith.constant 1024 : index
    %8 = vector.load %arg2[%c0_6, %c1024] : memref<16x4096xf32, #tpu.memory_space<vmem>>, vector<16x1024xf32>
    %c0_7 = arith.constant 0 : index
    %c1024_8 = arith.constant 1024 : index
    %9 = vector.load %arg1[%c0_7, %c1024_8] : memref<16x4096xf32, #tpu.memory_space<vmem>>, vector<16x1024xf32>
    %10 = arith.subf %8, %9 : vector<16x1024xf32>
    %11 = arith.mulf %10, %10 : vector<16x1024xf32>
    %12 = arith.addf %7, %11 : vector<16x1024xf32>
    %c0_9 = arith.constant 0 : index
    %c2048 = arith.constant 2048 : index
    %13 = vector.load %arg2[%c0_9, %c2048] : memref<16x4096xf32, #tpu.memory_space<vmem>>, vector<16x1024xf32>
    %c0_10 = arith.constant 0 : index
    %c2048_11 = arith.constant 2048 : index
    %14 = vector.load %arg1[%c0_10, %c2048_11] : memref<16x4096xf32, #tpu.memory_space<vmem>>, vector<16x1024xf32>
    %15 = arith.subf %13, %14 : vector<16x1024xf32>
    %16 = arith.mulf %15, %15 : vector<16x1024xf32>
    %17 = arith.addf %12, %16 : vector<16x1024xf32>
    %c0_12 = arith.constant 0 : index
    %c3072 = arith.constant 3072 : index
    %18 = vector.load %arg2[%c0_12, %c3072] : memref<16x4096xf32, #tpu.memory_space<vmem>>, vector<16x1024xf32>
    %c0_13 = arith.constant 0 : index
    %c3072_14 = arith.constant 3072 : index
    %19 = vector.load %arg1[%c0_13, %c3072_14] : memref<16x4096xf32, #tpu.memory_space<vmem>>, vector<16x1024xf32>
    %20 = arith.subf %18, %19 : vector<16x1024xf32>
    %21 = arith.mulf %20, %20 : vector<16x1024xf32>
    %c0_15 = arith.constant 0 : index
    %c0_16 = arith.constant 0 : index
    %22 = vector.load %arg5[%c0_15, %c0_16] : memref<16x1024xf32, #tpu.memory_space<vmem>>, vector<16x1024xf32>
    %cst = arith.constant 4.8828125E-4 : f32
    %23 = vector.broadcast %cst : f32 to vector<16x1024xf32>
    %24 = arith.mulf %23, %17 : vector<16x1024xf32>
    %cst_17 = arith.constant 4.8828125E-4 : f32
    %25 = vector.broadcast %cst_17 : f32 to vector<16x1024xf32>
    %26 = arith.mulf %25, %21 : vector<16x1024xf32>
    %27 = arith.addf %24, %26 : vector<16x1024xf32>
    %28 = arith.mulf %3, %27 : vector<16x1024xf32>
    %29 = arith.addf %22, %28 : vector<16x1024xf32>
    %c0_18 = arith.constant 0 : index
    %c0_19 = arith.constant 0 : index
    %30 = vector.load %arg5[%c0_18, %c0_19] : memref<16x1024xf32, #tpu.memory_space<vmem>>, vector<16x1024xf32>
    tpu.vector_store %arg5[%c0_18, %c0_19], %29 {strides = array<i32>} : memref<16x1024xf32, #tpu.memory_space<vmem>>, vector<16x1024xf32>,
    %c0_i32_20 = arith.constant 0 : i32
    %31 = arith.cmpi eq, %arg0, %c0_i32_20 : i32
    %32 = arith.extui %31 : i1 to i32
    %c0_i32_21 = arith.constant 0 : i32
    %33 = arith.cmpi ne, %32, %c0_i32_21 : i32
    scf.if %33 {
      %c0_22 = arith.constant 0 : index
      %c0_23 = arith.constant 0 : index
      %34 = vector.load %arg5[%c0_22, %c0_23] : memref<16x1024xf32, #tpu.memory_space<vmem>>, vector<16x1024xf32>
      %35 = vector.shape_cast %34 : vector<16x1024xf32> to vector<1x16x1024xf32>
      %cst_24 = arith.constant dense<0.000000e+00> : vector<1xf32>
      %36 = vector.multi_reduction <add>, %35, %cst_24 [1, 2] : vector<1x16x1024xf32> to vector<1xf32>
      %37 = vector.shape_cast %36 : vector<1xf32> to vector<1x1x1xf32>
      %38 = vector.extract %37[0, 0, 0] : f32 from vector<1x1x1xf32>
      %c0_25 = arith.constant 0 : index
      %c0_26 = arith.constant 0 : index
      %39 = memref.load %arg4[%c0_25, %c0_26] : memref<1x1xf32, #tpu.memory_space<smem>>
      memref.store %38, %arg4[%c0_25, %c0_26] : memref<1x1xf32, #tpu.memory_space<smem>>
    } else {
    }
    return
  }
  func.func @transform_0(%arg0: i32) -> (i32, i32) {
    %c0_i32 = arith.constant 0 : i32
    %c0_i32_0 = arith.constant 0 : i32
    return %arg0, %c0_i32 : i32, i32
  }
  func.func @transform_1(%arg0: i32) -> (i32, i32) {
    %c0_i32 = arith.constant 0 : i32
    %c0_i32_0 = arith.constant 0 : i32
    return %arg0, %c0_i32 : i32, i32
  }
  func.func @transform_2(%arg0: i32) -> (i32, i32) {
    %c0_i32 = arith.constant 0 : i32
    %c0_i32_0 = arith.constant 0 : i32
    return %arg0, %c0_i32 : i32, i32
  }
  func.func @transform_3(%arg0: i32) -> (i32, i32) {
    %c0_i32 = arith.constant 0 : i32
    %c0_i32_0 = arith.constant 0 : i32
    %c0_i32_1 = arith.constant 0 : i32
    return %c0_i32, %c0_i32_0 : i32, i32
  }
}

</mosaic_0001>

<llo_original>
// kernel: tpu_custom_call.1
$region0: #{tpu_custom_call.1}
  #allocation0 [shape = 'u32[]', space=smem, size = 0x4, offset = 0x4, fixed_abs, tag = 'smem constant byte address 0x4 - core index']
  #allocation1 [shape = 'u32[144,128]{1,0:T(1,128)}', space=vmem, size = 0x12000, scoped, tag = 'internal scratch']
  #allocation2 [shape = 'f32[16,1024]{1,0:T(8,128)}', space=vmem, size = 0x10000, scoped, tag = 'scratch operand']
  %s0 = inlined_call_operand.hbm [shape: f32[16,4096], index: 0, kind: input, shape index: {}]
  %s1 = inlined_call_operand.hbm [shape: f32[16,4096], index: 1, kind: input, shape index: {}]
  %s2 = inlined_call_operand.hbm [shape: f32[16,1024], index: 2, kind: input, shape index: {}]
  %s3 = inlined_call_operand.hbm [shape: f32[1,1], index: 3, kind: output, shape index: {}]
  %s4 = sld [smem:[#allocation0]]
  $region42: #{tpu_custom_call.1} parent=0
    _
  %s6 = ssub.s32 1, %s4
  %s7 = scalar_select 0, %s6, %s4
  $region1: #{tpu_custom_call.1} parent=0
    #allocation3 [shape = 'u8[262144]{0}', space=vmem, size = 0x40000, scoped, tag = 'input window, operand 0, single buffered']
    #allocation4 [shape = 's32[1]{0}', space=sflag, size = 0x4, scoped, tag = 'scoped memory for tpu_custom_call.1']
    #allocation5 [shape = 's32[1]{0}', space=sflag, size = 0x4, scoped, tag = 'scoped memory for tpu_custom_call.1']
    #allocation6 [shape = 'u8[262144]{0}', space=vmem, size = 0x40000, scoped, tag = 'input window, operand 1, single buffered']
    #allocation7 [shape = 's32[1]{0}', space=sflag, size = 0x4, scoped, tag = 'scoped memory for tpu_custom_call.1']
    #allocation8 [shape = 'u8[65536]{0}', space=vmem, size = 0x10000, scoped, tag = 'input window, operand 2, single buffered']
    #allocation9 [shape = 'u8[512]{0}', space=smem, size = 0x200, scoped, tag = 'output window, operand 0, single buffered']
    %8 = vsyncpa [#allocation4], 0
    %9 = vsyncpa [#allocation7], 0
    %10 = vsyncpa [#allocation5], 0
    // Predicated region
    $region2: #{tpu_custom_call.1} parent=1 // pred_check
      _
    $region3: #{tpu_custom_call.1} parent=1 // pred_check_branch
      %12 = sbr.rel (0) target = $region5
    $region4: #{tpu_custom_call.1} parent=1 // pred_region
      %s14 = ssub.s32 8192, 8192
      %15 = vsyncadd [#allocation4], %s14
      %s16 = sshll.u32 [#allocation3], 4
      %s17 = int_to_ptr.vmem [resolvable:$true] %s16
      %22 = dma.hbm_to_vmem [thread:$0]  %s0, 8192, %s17, [#allocation4], 4096, 4096, 256
    $region5: #{tpu_custom_call.1} parent=1 // pred_fallthru
      _
    // Predicated region
    $region6: #{tpu_custom_call.1} parent=1 // pred_check
      _
    $region7: #{tpu_custom_call.1} parent=1 // pred_check_branch
      %24 = sbr.rel (0) target = $region9
    $region8: #{tpu_custom_call.1} parent=1 // pred_region
      %s26 = ssub.s32 8192, 8192
      %27 = vsyncadd [#allocation7], %s26
      %s28 = sshll.u32 [#allocation6], 4
      %s29 = int_to_ptr.vmem [resolvable:$true] %s28
      %34 = dma.hbm_to_vmem [thread:$0]  %s1, 8192, %s29, [#allocation7], 4096, 4096, 256
    $region9: #{tpu_custom_call.1} parent=1 // pred_fallthru
      _
    // Predicated region
    $region10: #{tpu_custom_call.1} parent=1 // pred_check
      _
    $region11: #{tpu_custom_call.1} parent=1 // pred_check_branch
      %36 = sbr.rel (0) target = $region13
    $region12: #{tpu_custom_call.1} parent=1 // pred_region
      %s38 = ssub.s32 2048, 2048
      %39 = vsyncadd [#allocation7], %s38
      %s40 = sshll.u32 [#allocation8], 4
      %s41 = int_to_ptr.vmem [resolvable:$true] %s40
      %46 = dma.hbm_to_vmem [thread:$0]  %s2, 2048, %s41, [#allocation7], 1024, 1024, 64
    $region13: #{tpu_custom_call.1} parent=1 // pred_fallthru
      _
    // Predicated region
    $region14: #{tpu_custom_call.1} parent=1 // pred_check
      _
    $region15: #{tpu_custom_call.1} parent=1 // pred_check_branch
      %48 = sbr.rel (0) target = $region17
    $region16: #{tpu_custom_call.1} parent=1 // pred_region
      %49 = dma.done [#allocation4], 8192
    $region17: #{tpu_custom_call.1} parent=1 // pred_fallthru
      _
    // Predicated region
    $region18: #{tpu_custom_call.1} parent=1 // pred_check
      _
    $region19: #{tpu_custom_call.1} parent=1 // pred_check_branch
      %51 = sbr.rel (0) target = $region21
    $region20: #{tpu_custom_call.1} parent=1 // pred_region
      %52 = dma.done [#allocation7], 8192
    $region21: #{tpu_custom_call.1} parent=1 // pred_fallthru
      _
    // Predicated region
    $region22: #{tpu_custom_call.1} parent=1 // pred_check
      _
    $region23: #{tpu_custom_call.1} parent=1 // pred_check_branch
      %54 = sbr.rel (0) target = $region25
    $region24: #{tpu_custom_call.1} parent=1 // pred_region
      %55 = dma.done [#allocation7], 2048
    $region25: #{tpu_custom_call.1} parent=1 // pred_fallthru
      _
    %p56 = scmp.eq.s32.totalorder 0, 0
    // Predicated region
    $region26: #{tpu_custom_call.1} parent=1 // pred_check
      %p57 = pneg %p56
    $region27: #{tpu_custom_call.1} parent=1 // pred_check_branch
      %59 = sbr.rel (%p57) target = $region29
    $region28: #{tpu_custom_call.1} parent=1 // pred_region
      %60 = vst [vmem:[#allocation2] sm:$0xff] 0.0
      %61 = vst [vmem:[#allocation2 + $0x8] sm:$0xff] 0.0
      %62 = vst [vmem:[#allocation2 + $0x10] sm:$0xff] 0.0
      %63 = vst [vmem:[#allocation2 + $0x18] sm:$0xff] 0.0
      %64 = vst [vmem:[#allocation2 + $0x20] sm:$0xff] 0.0
      %65 = vst [vmem:[#allocation2 + $0x28] sm:$0xff] 0.0
      %66 = vst [vmem:[#allocation2 + $0x30] sm:$0xff] 0.0
      %67 = vst [vmem:[#allocation2 + $0x38] sm:$0xff] 0.0
      %68 = vst [vmem:[#allocation2 + $0x40] sm:$0xff] 0.0
      %69 = vst [vmem:[#allocation2 + $0x48] sm:$0xff] 0.0
      %70 = vst [vmem:[#allocation2 + $0x50] sm:$0xff] 0.0
      %71 = vst [vmem:[#allocation2 + $0x58] sm:$0xff] 0.0
      %72 = vst [vmem:[#allocation2 + $0x60] sm:$0xff] 0.0
      %73 = vst [vmem:[#allocation2 + $0x68] sm:$0xff] 0.0
      %74 = vst [vmem:[#allocation2 + $0x70] sm:$0xff] 0.0
      %75 = vst [vmem:[#allocation2 + $0x78] sm:$0xff] 0.0
    $region29: #{tpu_custom_call.1} parent=1 // pred_fallthru
      _
    %v76 = vld [vmem:[#allocation8] sm:$0xff]
    %v77 = vld [vmem:[#allocation8 + $0x8] sm:$0xff]
    %v78 = vld [vmem:[#allocation8 + $0x10] sm:$0xff]
    %v79 = vld [vmem:[#allocation8 + $0x18] sm:$0xff]
    %v80 = vld [vmem:[#allocation8 + $0x20] sm:$0xff]
    %v81 = vld [vmem:[#allocation8 + $0x28] sm:$0xff]
    %v82 = vld [vmem:[#allocation8 + $0x30] sm:$0xff]
    %v83 = vld [vmem:[#allocation8 + $0x38] sm:$0xff]
    %v84 = vld [vmem:[#allocation8 + $0x40] sm:$0xff]
    %v85 = vld [vmem:[#allocation8 + $0x48] sm:$0xff]
    %v86 = vld [vmem:[#allocation8 + $0x50] sm:$0xff]
    %v87 = vld [vmem:[#allocation8 + $0x58] sm:$0xff]
    %v88 = vld [vmem:[#allocation8 + $0x60] sm:$0xff]
    %v89 = vld [vmem:[#allocation8 + $0x68] sm:$0xff]
    %v90 = vld [vmem:[#allocation8 + $0x70] sm:$0xff]
    %v91 = vld [vmem:[#allocation8 + $0x78] sm:$0xff]
    %v92 = vld [vmem:[#allocation6] sm:$0xff]
    %v93 = vld [vmem:[#allocation6 + $0x8] sm:$0xff]
    %v94 = vld [vmem:[#allocation6 + $0x10] sm:$0xff]
    %v95 = vld [vmem:[#allocation6 + $0x18] sm:$0xff]
    %v96 = vld [vmem:[#allocation6 + $0x20] sm:$0xff]
    %v97 = vld [vmem:[#allocation6 + $0x28] sm:$0xff]
    %v98 = vld [vmem:[#allocation6 + $0x30] sm:$0xff]
    %v99 = vld [vmem:[#allocation6 + $0x38] sm:$0xff]
    %v100 = vld [vmem:[#allocation6 + $0x100] sm:$0xff]
    %v101 = vld [vmem:[#allocation6 + $0x108] sm:$0xff]
    %v102 = vld [vmem:[#allocation6 + $0x110] sm:$0xff]
    %v103 = vld [vmem:[#allocation6 + $0x118] sm:$0xff]
    %v104 = vld [vmem:[#allocation6 + $0x120] sm:$0xff]
    %v105 = vld [vmem:[#allocation6 + $0x128] sm:$0xff]
    %v106 = vld [vmem:[#allocation6 + $0x130] sm:$0xff]
    %v107 = vld [vmem:[#allocation6 + $0x138] sm:$0xff]
    %v108 = vld [vmem:[#allocation3] sm:$0xff]
    %v109 = vld [vmem:[#allocation3 + $0x8] sm:$0xff]
    %v110 = vld [vmem:[#allocation3 + $0x10] sm:$0xff]
    %v111 = vld [vmem:[#allocation3 + $0x18] sm:$0xff]
    %v112 = vld [vmem:[#allocation3 + $0x20] sm:$0xff]
    %v113 = vld [vmem:[#allocation3 + $0x28] sm:$0xff]
    %v114 = vld [vmem:[#allocation3 + $0x30] sm:$0xff]
    %v115 = vld [vmem:[#allocation3 + $0x38] sm:$0xff]
    %v116 = vld [vmem:[#allocation3 + $0x100] sm:$0xff]
    %v117 = vld [vmem:[#allocation3 + $0x108] sm:$0xff]
    %v118 = vld [vmem:[#allocation3 + $0x110] sm:$0xff]
    %v119 = vld [vmem:[#allocation3 + $0x118] sm:$0xff]
    %v120 = vld [vmem:[#allocation3 + $0x120] sm:$0xff]
    %v121 = vld [vmem:[#allocation3 + $0x128] sm:$0xff]
    %v122 = vld [vmem:[#allocation3 + $0x130] sm:$0xff]
    %v123 = vld [vmem:[#allocation3 + $0x138] sm:$0xff]
    %v124 = vsub.f32 %v92, %v108
    %v125 = vsub.f32 %v93, %v109
    %v126 = vsub.f32 %v94, %v110
    %v127 = vsub.f32 %v95, %v111
    %v128 = vsub.f32 %v96, %v112
    %v129 = vsub.f32 %v97, %v113
    %v130 = vsub.f32 %v98, %v114
    %v131 = vsub.f32 %v99, %v115
    %v132 = vsub.f32 %v100, %v116
    %v133 = vsub.f32 %v101, %v117
    %v134 = vsub.f32 %v102, %v118
    %v135 = vsub.f32 %v103, %v119
    %v136 = vsub.f32 %v104, %v120
    %v137 = vsub.f32 %v105, %v121
    %v138 = vsub.f32 %v106, %v122
    %v139 = vsub.f32 %v107, %v123
    %v140 = vmul.f32 %v124, %v124
    %v141 = vmul.f32 %v125, %v125
    %v142 = vmul.f32 %v126, %v126
    %v143 = vmul.f32 %v127, %v127
    %v144 = vmul.f32 %v128, %v128
    %v145 = vmul.f32 %v129, %v129
    %v146 = vmul.f32 %v130, %v130
    %v147 = vmul.f32 %v131, %v131
    %v148 = vmul.f32 %v132, %v132
    %v149 = vmul.f32 %v133, %v133
    %v150 = vmul.f32 %v134, %v134
    %v151 = vmul.f32 %v135, %v135
    %v152 = vmul.f32 %v136, %v136
    %v153 = vmul.f32 %v137, %v137
    %v154 = vmul.f32 %v138, %v138
    %v155 = vmul.f32 %v139, %v139
    %v156 = vld [vmem:[#allocation6 + $0x40] sm:$0xff]
    %v157 = vld [vmem:[#allocation6 + $0x48] sm:$0xff]
    %v158 = vld [vmem:[#allocation6 + $0x50] sm:$0xff]
    %v159 = vld [vmem:[#allocation6 + $0x58] sm:$0xff]
    %v160 = vld [vmem:[#allocation6 + $0x60] sm:$0xff]
    %v161 = vld [vmem:[#allocation6 + $0x68] sm:$0xff]
    %v162 = vld [vmem:[#allocation6 + $0x70] sm:$0xff]
    %v163 = vld [vmem:[#allocation6 + $0x78] sm:$0xff]
    %v164 = vld [vmem:[#allocation6 + $0x140] sm:$0xff]
    %v165 = vld [vmem:[#allocation6 + $0x148] sm:$0xff]
    %v166 = vld [vmem:[#allocation6 + $0x150] sm:$0xff]
    %v167 = vld [vmem:[#allocation6 + $0x158] sm:$0xff]
    %v168 = vld [vmem:[#allocation6 + $0x160] sm:$0xff]
    %v169 = vld [vmem:[#allocation6 + $0x168] sm:$0xff]
    %v170 = vld [vmem:[#allocation6 + $0x170] sm:$0xff]
    %v171 = vld [vmem:[#allocation6 + $0x178] sm:$0xff]
    %v172 = vld [vmem:[#allocation3 + $0x40] sm:$0xff]
    %v173 = vld [vmem:[#allocation3 + $0x48] sm:$0xff]
    %v174 = vld [vmem:[#allocation3 + $0x50] sm:$0xff]
    %v175 = vld [vmem:[#allocation3 + $0x58] sm:$0xff]
    %v176 = vld [vmem:[#allocation3 + $0x60] sm:$0xff]
    %v177 = vld [vmem:[#allocation3 + $0x68] sm:$0xff]
    %v178 = vld [vmem:[#allocation3 + $0x70] sm:$0xff]
    %v179 = vld [vmem:[#allocation3 + $0x78] sm:$0xff]
    %v180 = vld [vmem:[#allocation3 + $0x140] sm:$0xff]
    %v181 = vld [vmem:[#allocation3 + $0x148] sm:$0xff]
    %v182 = vld [vmem:[#allocation3 + $0x150] sm:$0xff]
    %v183 = vld [vmem:[#allocation3 + $0x158] sm:$0xff]
    %v184 = vld [vmem:[#allocation3 + $0x160] sm:$0xff]
    %v185 = vld [vmem:[#allocation3 + $0x168] sm:$0xff]
    %v186 = vld [vmem:[#allocation3 + $0x170] sm:$0xff]
    %v187 = vld [vmem:[#allocation3 + $0x178] sm:$0xff]
    %v188 = vsub.f32 %v156, %v172
    %v189 = vsub.f32 %v157, %v173
    %v190 = vsub.f32 %v158, %v174
    %v191 = vsub.f32 %v159, %v175
    %v192 = vsub.f32 %v160, %v176
    %v193 = vsub.f32 %v161, %v177
    %v194 = vsub.f32 %v162, %v178
    %v195 = vsub.f32 %v163, %v179
    %v196 = vsub.f32 %v164, %v180
    %v197 = vsub.f32 %v165, %v181
    %v198 = vsub.f32 %v166, %v182
    %v199 = vsub.f32 %v167, %v183
    %v200 = vsub.f32 %v168, %v184
    %v201 = vsub.f32 %v169, %v185
    %v202 = vsub.f32 %v170, %v186
    %v203 = vsub.f32 %v171, %v187
    %v204 = vmul.f32 %v188, %v188
    %v205 = vmul.f32 %v189, %v189
    %v206 = vmul.f32 %v190, %v190
    %v207 = vmul.f32 %v191, %v191
    %v208 = vmul.f32 %v192, %v192
    %v209 = vmul.f32 %v193, %v193
    %v210 = vmul.f32 %v194, %v194
    %v211 = vmul.f32 %v195, %v195
    %v212 = vmul.f32 %v196, %v196
    %v213 = vmul.f32 %v197, %v197
    %v214 = vmul.f32 %v198, %v198
    %v215 = vmul.f32 %v199, %v199
    %v216 = vmul.f32 %v200, %v200
    %v217 = vmul.f32 %v201, %v201
    %v218 = vmul.f32 %v202, %v202
    %v219 = vmul.f32 %v203, %v203
    %v220 = vadd.f32 %v140, %v204
    %v221 = vadd.f32 %v141, %v205
    %v222 = vadd.f32 %v142, %v206
    %v223 = vadd.f32 %v143, %v207
    %v224 = vadd.f32 %v144, %v208
    %v225 = vadd.f32 %v145, %v209
    %v226 = vadd.f32 %v146, %v210
    %v227 = vadd.f32 %v147, %v211
    %v228 = vadd.f32 %v148, %v212
    %v229 = vadd.f32 %v149, %v213
    %v230 = vadd.f32 %v150, %v214
    %v231 = vadd.f32 %v151, %v215
    %v232 = vadd.f32 %v152, %v216
    %v233 = vadd.f32 %v153, %v217
    %v234 = vadd.f32 %v154, %v218
    %v235 = vadd.f32 %v155, %v219
    %v236 = vld [vmem:[#allocation6 + $0x80] sm:$0xff]
    %v237 = vld [vmem:[#allocation6 + $0x88] sm:$0xff]
    %v238 = vld [vmem:[#allocation6 + $0x90] sm:$0xff]
    %v239 = vld [vmem:[#allocation6 + $0x98] sm:$0xff]
    %v240 = vld [vmem:[#allocation6 + $0xa0] sm:$0xff]
    %v241 = vld [vmem:[#allocation6 + $0xa8] sm:$0xff]
    %v242 = vld [vmem:[#allocation6 + $0xb0] sm:$0xff]
    %v243 = vld [vmem:[#allocation6 + $0xb8] sm:$0xff]
    %v244 = vld [vmem:[#allocation6 + $0x180] sm:$0xff]
    %v245 = vld [vmem:[#allocation6 + $0x188] sm:$0xff]
    %v246 = vld [vmem:[#allocation6 + $0x190] sm:$0xff]
    %v247 = vld [vmem:[#allocation6 + $0x198] sm:$0xff]
    %v248 = vld [vmem:[#allocation6 + $0x1a0] sm:$0xff]
    %v249 = vld [vmem:[#allocation6 + $0x1a8] sm:$0xff]
    %v250 = vld [vmem:[#allocation6 + $0x1b0] sm:$0xff]
    %v251 = vld [vmem:[#allocation6 + $0x1b8] sm:$0xff]
    %v252 = vld [vmem:[#allocation3 + $0x80] sm:$0xff]
    %v253 = vld [vmem:[#allocation3 + $0x88] sm:$0xff]
    %v254 = vld [vmem:[#allocation3 + $0x90] sm:$0xff]
    %v255 = vld [vmem:[#allocation3 + $0x98] sm:$0xff]
    %v256 = vld [vmem:[#allocation3 + $0xa0] sm:$0xff]
    %v257 = vld [vmem:[#allocation3 + $0xa8] sm:$0xff]
    %v258 = vld [vmem:[#allocation3 + $0xb0] sm:$0xff]
    %v259 = vld [vmem:[#allocation3 + $0xb8] sm:$0xff]
    %v260 = vld [vmem:[#allocation3 + $0x180] sm:$0xff]
    %v261 = vld [vmem:[#allocation3 + $0x188] sm:$0xff]
    %v262 = vld [vmem:[#allocation3 + $0x190] sm:$0xff]
    %v263 = vld [vmem:[#allocation3 + $0x198] sm:$0xff]
    %v264 = vld [vmem:[#allocation3 + $0x1a0] sm:$0xff]
    %v265 = vld [vmem:[#allocation3 + $0x1a8] sm:$0xff]
    %v266 = vld [vmem:[#allocation3 + $0x1b0] sm:$0xff]
    %v267 = vld [vmem:[#allocation3 + $0x1b8] sm:$0xff]
    %v268 = vsub.f32 %v236, %v252
    %v269 = vsub.f32 %v237, %v253
    %v270 = vsub.f32 %v238, %v254
    %v271 = vsub.f32 %v239, %v255
    %v272 = vsub.f32 %v240, %v256
    %v273 = vsub.f32 %v241, %v257
    %v274 = vsub.f32 %v242, %v258
    %v275 = vsub.f32 %v243, %v259
    %v276 = vsub.f32 %v244, %v260
    %v277 = vsub.f32 %v245, %v261
    %v278 = vsub.f32 %v246, %v262
    %v279 = vsub.f32 %v247, %v263
    %v280 = vsub.f32 %v248, %v264
    %v281 = vsub.f32 %v249, %v265
    %v282 = vsub.f32 %v250, %v266
    %v283 = vsub.f32 %v251, %v267
    %v284 = vmul.f32 %v268, %v268
    %v285 = vmul.f32 %v269, %v269
    %v286 = vmul.f32 %v270, %v270
    %v287 = vmul.f32 %v271, %v271
    %v288 = vmul.f32 %v272, %v272
    %v289 = vmul.f32 %v273, %v273
    %v290 = vmul.f32 %v274, %v274
    %v291 = vmul.f32 %v275, %v275
    %v292 = vmul.f32 %v276, %v276
    %v293 = vmul.f32 %v277, %v277
    %v294 = vmul.f32 %v278, %v278
    %v295 = vmul.f32 %v279, %v279
    %v296 = vmul.f32 %v280, %v280
    %v297 = vmul.f32 %v281, %v281
    %v298 = vmul.f32 %v282, %v282
    %v299 = vmul.f32 %v283, %v283
    %v300 = vadd.f32 %v220, %v284
    %v301 = vadd.f32 %v221, %v285
    %v302 = vadd.f32 %v222, %v286
    %v303 = vadd.f32 %v223, %v287
    %v304 = vadd.f32 %v224, %v288
    %v305 = vadd.f32 %v225, %v289
    %v306 = vadd.f32 %v226, %v290
    %v307 = vadd.f32 %v227, %v291
    %v308 = vadd.f32 %v228, %v292
    %v309 = vadd.f32 %v229, %v293
    %v310 = vadd.f32 %v230, %v294
    %v311 = vadd.f32 %v231, %v295
    %v312 = vadd.f32 %v232, %v296
    %v313 = vadd.f32 %v233, %v297
    %v314 = vadd.f32 %v234, %v298
    %v315 = vadd.f32 %v235, %v299
    %v316 = vld [vmem:[#allocation6 + $0xc0] sm:$0xff]
    %v317 = vld [vmem:[#allocation6 + $0xc8] sm:$0xff]
    %v318 = vld [vmem:[#allocation6 + $0xd0] sm:$0xff]
    %v319 = vld [vmem:[#allocation6 + $0xd8] sm:$0xff]
    %v320 = vld [vmem:[#allocation6 + $0xe0] sm:$0xff]
    %v321 = vld [vmem:[#allocation6 + $0xe8] sm:$0xff]
    %v322 = vld [vmem:[#allocation6 + $0xf0] sm:$0xff]
    %v323 = vld [vmem:[#allocation6 + $0xf8] sm:$0xff]
    %v324 = vld [vmem:[#allocation6 + $0x1c0] sm:$0xff]
    %v325 = vld [vmem:[#allocation6 + $0x1c8] sm:$0xff]
    %v326 = vld [vmem:[#allocation6 + $0x1d0] sm:$0xff]
    %v327 = vld [vmem:[#allocation6 + $0x1d8] sm:$0xff]
    %v328 = vld [vmem:[#allocation6 + $0x1e0] sm:$0xff]
    %v329 = vld [vmem:[#allocation6 + $0x1e8] sm:$0xff]
    %v330 = vld [vmem:[#allocation6 + $0x1f0] sm:$0xff]
    %v331 = vld [vmem:[#allocation6 + $0x1f8] sm:$0xff]
    %v332 = vld [vmem:[#allocation3 + $0xc0] sm:$0xff]
    %v333 = vld [vmem:[#allocation3 + $0xc8] sm:$0xff]
    %v334 = vld [vmem:[#allocation3 + $0xd0] sm:$0xff]
    %v335 = vld [vmem:[#allocation3 + $0xd8] sm:$0xff]
    %v336 = vld [vmem:[#allocation3 + $0xe0] sm:$0xff]
    %v337 = vld [vmem:[#allocation3 + $0xe8] sm:$0xff]
    %v338 = vld [vmem:[#allocation3 + $0xf0] sm:$0xff]
    %v339 = vld [vmem:[#allocation3 + $0xf8] sm:$0xff]
    %v340 = vld [vmem:[#allocation3 + $0x1c0] sm:$0xff]
    %v341 = vld [vmem:[#allocation3 + $0x1c8] sm:$0xff]
    %v342 = vld [vmem:[#allocation3 + $0x1d0] sm:$0xff]
    %v343 = vld [vmem:[#allocation3 + $0x1d8] sm:$0xff]
    %v344 = vld [vmem:[#allocation3 + $0x1e0] sm:$0xff]
    %v345 = vld [vmem:[#allocation3 + $0x1e8] sm:$0xff]
    %v346 = vld [vmem:[#allocation3 + $0x1f0] sm:$0xff]
    %v347 = vld [vmem:[#allocation3 + $0x1f8] sm:$0xff]
    %v348 = vsub.f32 %v316, %v332
    %v349 = vsub.f32 %v317, %v333
    %v350 = vsub.f32 %v318, %v334
    %v351 = vsub.f32 %v319, %v335
    %v352 = vsub.f32 %v320, %v336
    %v353 = vsub.f32 %v321, %v337
    %v354 = vsub.f32 %v322, %v338
    %v355 = vsub.f32 %v323, %v339
    %v356 = vsub.f32 %v324, %v340
    %v357 = vsub.f32 %v325, %v341
    %v358 = vsub.f32 %v326, %v342
    %v359 = vsub.f32 %v327, %v343
    %v360 = vsub.f32 %v328, %v344
    %v361 = vsub.f32 %v329, %v345
    %v362 = vsub.f32 %v330, %v346
    %v363 = vsub.f32 %v331, %v347
    %v364 = vmul.f32 %v348, %v348
    %v365 = vmul.f32 %v349, %v349
    %v366 = vmul.f32 %v350, %v350
    %v367 = vmul.f32 %v351, %v351
    %v368 = vmul.f32 %v352, %v352
    %v369 = vmul.f32 %v353, %v353
    %v370 = vmul.f32 %v354, %v354
    %v371 = vmul.f32 %v355, %v355
    %v372 = vmul.f32 %v356, %v356
    %v373 = vmul.f32 %v357, %v357
    %v374 = vmul.f32 %v358, %v358
    %v375 = vmul.f32 %v359, %v359
    %v376 = vmul.f32 %v360, %v360
    %v377 = vmul.f32 %v361, %v361
    %v378 = vmul.f32 %v362, %v362
    %v379 = vmul.f32 %v363, %v363
    %v380 = vld [vmem:[#allocation2] sm:$0xff]
    %v381 = vld [vmem:[#allocation2 + $0x8] sm:$0xff]
    %v382 = vld [vmem:[#allocation2 + $0x10] sm:$0xff]
    %v383 = vld [vmem:[#allocation2 + $0x18] sm:$0xff]
    %v384 = vld [vmem:[#allocation2 + $0x20] sm:$0xff]
    %v385 = vld [vmem:[#allocation2 + $0x28] sm:$0xff]
    %v386 = vld [vmem:[#allocation2 + $0x30] sm:$0xff]
    %v387 = vld [vmem:[#allocation2 + $0x38] sm:$0xff]
    %v388 = vld [vmem:[#allocation2 + $0x40] sm:$0xff]
    %v389 = vld [vmem:[#allocation2 + $0x48] sm:$0xff]
    %v390 = vld [vmem:[#allocation2 + $0x50] sm:$0xff]
    %v391 = vld [vmem:[#allocation2 + $0x58] sm:$0xff]
    %v392 = vld [vmem:[#allocation2 + $0x60] sm:$0xff]
    %v393 = vld [vmem:[#allocation2 + $0x68] sm:$0xff]
    %v394 = vld [vmem:[#allocation2 + $0x70] sm:$0xff]
    %v395 = vld [vmem:[#allocation2 + $0x78] sm:$0xff]
    %v396 = vmul.f32 %v300, 0.00048828125
    %v397 = vmul.f32 %v301, 0.00048828125
    %v398 = vmul.f32 %v302, 0.00048828125
    %v399 = vmul.f32 %v303, 0.00048828125
    %v400 = vmul.f32 %v304, 0.00048828125
    %v401 = vmul.f32 %v305, 0.00048828125
    %v402 = vmul.f32 %v306, 0.00048828125
    %v403 = vmul.f32 %v307, 0.00048828125
    %v404 = vmul.f32 %v308, 0.00048828125
    %v405 = vmul.f32 %v309, 0.00048828125
    %v406 = vmul.f32 %v310, 0.00048828125
    %v407 = vmul.f32 %v311, 0.00048828125
    %v408 = vmul.f32 %v312, 0.00048828125
    %v409 = vmul.f32 %v313, 0.00048828125
    %v410 = vmul.f32 %v314, 0.00048828125
    %v411 = vmul.f32 %v315, 0.00048828125
    %v412 = vmul.f32 %v364, 0.00048828125
    %v413 = vmul.f32 %v365, 0.00048828125
    %v414 = vmul.f32 %v366, 0.00048828125
    %v415 = vmul.f32 %v367, 0.00048828125
    %v416 = vmul.f32 %v368, 0.00048828125
    %v417 = vmul.f32 %v369, 0.00048828125
    %v418 = vmul.f32 %v370, 0.00048828125
    %v419 = vmul.f32 %v371, 0.00048828125
    %v420 = vmul.f32 %v372, 0.00048828125
    %v421 = vmul.f32 %v373, 0.00048828125
    %v422 = vmul.f32 %v374, 0.00048828125
    %v423 = vmul.f32 %v375, 0.00048828125
    %v424 = vmul.f32 %v376, 0.00048828125
    %v425 = vmul.f32 %v377, 0.00048828125
    %v426 = vmul.f32 %v378, 0.00048828125
    %v427 = vmul.f32 %v379, 0.00048828125
    %v428 = vadd.f32 %v396, %v412
    %v429 = vadd.f32 %v397, %v413
    %v430 = vadd.f32 %v398, %v414
    %v431 = vadd.f32 %v399, %v415
    %v432 = vadd.f32 %v400, %v416
    %v433 = vadd.f32 %v401, %v417
    %v434 = vadd.f32 %v402, %v418
    %v435 = vadd.f32 %v403, %v419
    %v436 = vadd.f32 %v404, %v420
    %v437 = vadd.f32 %v405, %v421
    %v438 = vadd.f32 %v406, %v422
    %v439 = vadd.f32 %v407, %v423
    %v440 = vadd.f32 %v408, %v424
    %v441 = vadd.f32 %v409, %v425
    %v442 = vadd.f32 %v410, %v426
    %v443 = vadd.f32 %v411, %v427
    %v444 = vmul.f32 %v76, %v428
    %v445 = vmul.f32 %v77, %v429
    %v446 = vmul.f32 %v78, %v430
    %v447 = vmul.f32 %v79, %v431
    %v448 = vmul.f32 %v80, %v432
    %v449 = vmul.f32 %v81, %v433
    %v450 = vmul.f32 %v82, %v434
    %v451 = vmul.f32 %v83, %v435
    %v452 = vmul.f32 %v84, %v436
    %v453 = vmul.f32 %v85, %v437
    %v454 = vmul.f32 %v86, %v438
    %v455 = vmul.f32 %v87, %v439
    %v456 = vmul.f32 %v88, %v440
    %v457 = vmul.f32 %v89, %v441
    %v458 = vmul.f32 %v90, %v442
    %v459 = vmul.f32 %v91, %v443
    %v460 = vadd.f32 %v380, %v444
    %v461 = vadd.f32 %v381, %v445
    %v462 = vadd.f32 %v382, %v446
    %v463 = vadd.f32 %v383, %v447
    %v464 = vadd.f32 %v384, %v448
    %v465 = vadd.f32 %v385, %v449
    %v466 = vadd.f32 %v386, %v450
    %v467 = vadd.f32 %v387, %v451
    %v468 = vadd.f32 %v388, %v452
    %v469 = vadd.f32 %v389, %v453
    %v470 = vadd.f32 %v390, %v454
    %v471 = vadd.f32 %v391, %v455
    %v472 = vadd.f32 %v392, %v456
    %v473 = vadd.f32 %v393, %v457
    %v474 = vadd.f32 %v394, %v458
    %v475 = vadd.f32 %v395, %v459
    %476 = vst [vmem:[#allocation2] sm:$0xff] %v460
    %477 = vst [vmem:[#allocation2 + $0x8] sm:$0xff] %v461
    %478 = vst [vmem:[#allocation2 + $0x10] sm:$0xff] %v462
    %479 = vst [vmem:[#allocation2 + $0x18] sm:$0xff] %v463
    %480 = vst [vmem:[#allocation2 + $0x20] sm:$0xff] %v464
    %481 = vst [vmem:[#allocation2 + $0x28] sm:$0xff] %v465
    %482 = vst [vmem:[#allocation2 + $0x30] sm:$0xff] %v466
    %483 = vst [vmem:[#allocation2 + $0x38] sm:$0xff] %v467
    %484 = vst [vmem:[#allocation2 + $0x40] sm:$0xff] %v468
    %485 = vst [vmem:[#allocation2 + $0x48] sm:$0xff] %v469
    %486 = vst [vmem:[#allocation2 + $0x50] sm:$0xff] %v470
    %487 = vst [vmem:[#allocation2 + $0x58] sm:$0xff] %v471
    %488 = vst [vmem:[#allocation2 + $0x60] sm:$0xff] %v472
    %489 = vst [vmem:[#allocation2 + $0x68] sm:$0xff] %v473
    %490 = vst [vmem:[#allocation2 + $0x70] sm:$0xff] %v474
    %491 = vst [vmem:[#allocation2 + $0x78] sm:$0xff] %v475
    // Predicated region
    $region30: #{tpu_custom_call.1} parent=1 // pred_check
      %p492 = pneg %p56
    $region31: #{tpu_custom_call.1} parent=1 // pred_check_branch
      %494 = sbr.rel (%p492) target = $region33
    $region32: #{tpu_custom_call.1} parent=1 // pred_region
      %v495 = vld [vmem:[#allocation2] sm:$0xff]
      %v496 = vld [vmem:[#allocation2 + $0x8] sm:$0xff]
      %v497 = vld [vmem:[#allocation2 + $0x10] sm:$0xff]
      %v498 = vld [vmem:[#allocation2 + $0x18] sm:$0xff]
      %v499 = vld [vmem:[#allocation2 + $0x20] sm:$0xff]
      %v500 = vld [vmem:[#allocation2 + $0x28] sm:$0xff]
      %v501 = vld [vmem:[#allocation2 + $0x30] sm:$0xff]
      %v502 = vld [vmem:[#allocation2 + $0x38] sm:$0xff]
      %v503 = vld [vmem:[#allocation2 + $0x40] sm:$0xff]
      %v504 = vld [vmem:[#allocation2 + $0x48] sm:$0xff]
      %v505 = vld [vmem:[#allocation2 + $0x50] sm:$0xff]
      %v506 = vld [vmem:[#allocation2 + $0x58] sm:$0xff]
      %v507 = vld [vmem:[#allocation2 + $0x60] sm:$0xff]
      %v508 = vld [vmem:[#allocation2 + $0x68] sm:$0xff]
      %v509 = vld [vmem:[#allocation2 + $0x70] sm:$0xff]
      %v510 = vld [vmem:[#allocation2 + $0x78] sm:$0xff]
      %v511 = vadd.f32 %v495, %v496
      %v512 = vadd.f32 %v511, %v497
      %v513 = vadd.f32 %v512, %v498
      %v514 = vadd.f32 %v513, %v499
      %v515 = vadd.f32 %v514, %v500
      %v516 = vadd.f32 %v515, %v501
      %v517 = vadd.f32 %v516, %v502
      %v518 = vadd.f32 %v517, %v503
      %v519 = vadd.f32 %v518, %v504
      %v520 = vadd.f32 %v519, %v505
      %v521 = vadd.f32 %v520, %v506
      %v522 = vadd.f32 %v521, %v507
      %v523 = vadd.f32 %v522, %v508
      %v524 = vadd.f32 %v523, %v509
      %v525 = vadd.f32 %v524, %v510
      %526 = vadd.xlane.f32.xlu0 %v525
      %v527 = vpop.xlane.xlu0 %526
      %v528 = vrot.slane %v527, 4
      %v529 = vadd.f32 %v527, %v528
      %v530 = vrot.slane %v529, 2
      %v531 = vadd.f32 %v529, %v530
      %v532 = vrot.slane %v531, 1
      %v533 = vadd.f32 %v531, %v532
      %s534 = vtos %v533
      %s535 = scalar_lea.smem [#allocation9], 0
      %536 = sst [smem:[%s535]] %s534
    $region33: #{tpu_custom_call.1} parent=1 // pred_fallthru
      _
    // Predicated region
    $region34: #{tpu_custom_call.1} parent=1 // pred_check
      _
    $region35: #{tpu_custom_call.1} parent=1 // pred_check_branch
      %538 = sbr.rel (0) target = $region37
    $region36: #{tpu_custom_call.1} parent=1 // pred_region
      %s540 = ssub.s32 16, 16
      %541 = vsyncadd [#allocation5], %s540
      %544 = dma.smem_to_hbm [#allocation9], 16, %s3, [#allocation5]
    $region37: #{tpu_custom_call.1} parent=1 // pred_fallthru
      _
    // Predicated region
    $region38: #{tpu_custom_call.1} parent=1 // pred_check
      _
    $region39: #{tpu_custom_call.1} parent=1 // pred_check_branch
      %546 = sbr.rel (0) target = $region41
    $region40: #{tpu_custom_call.1} parent=1 // pred_region
      %547 = dma.done [#allocation5], 16
    $region41: #{tpu_custom_call.1} parent=1 // pred_fallthru
      _
    %548 = sfence
    %549 = vsyncpa [#allocation4], 1
    %550 = vsyncpa [#allocation7], 1
    %551 = vsyncpa [#allocation5], 1

</llo_original>
